<compile_context>
chip_gen: v6e
topology: v6e:2x2x1
jax: 0.10.0
libtpu: 0.0.40
codegen_flags: <defaults>
</compile_context>

<pallas_src>
import functools

import jax
import jax.numpy as jnp
import numpy as np
from jax import lax
from jax.experimental import pallas as pl
from jax.experimental.pallas import tpu as pltpu


def _round_up(a, b):
    return ((a + b - 1) // b) * b


def _pick_vmem_limit(tm, ti, H):
    """Tile-footprint-derived VMEM limit, clamped to the chip's capacity."""
    x_b = 2 * tm * H * 2                 # bf16 activations, double-buffered
    w13_b = 2 * (2 * ti) * H * 2         # merged gate+up slice, double-buffered
    w2_b = 2 * H * ti * 2                # down-proj slice, double-buffered
    wr_b = 2 * tm * 4                    # router-weight column
    out_b = 2 * tm * H * 2               # bf16 output tile, double-buffered
    acc_b = tm * H * 4                   # f32 accumulator scratch
    need = x_b + w13_b + w2_b + wr_b + out_b + acc_b
    try:
        cap = getattr(pltpu.get_tpu_info(), "vmem_capacity_bytes", 64 << 20)
    except Exception:  # pragma: no cover - defensive, keep conservative cap
        cap = 64 << 20
    return int(min(max(2 * need, 32 << 20), int(cap * 0.85)))


# ----------------------------- Pallas kernel ------------------------------ #
def _grouped_moe_kernel(te_ref, ta_ref, x_ref, w13_ref, w2_ref, wr_ref,
                        out_ref, acc_ref, *, ti):
    """Grid = (row_tiles ["parallel"], intermediate_tiles ["arbitrary"]).

    Each row tile of the expert-sorted, tile-padded token matrix belongs to
    exactly one expert (te_ref[r]); the expert-MLP intermediate dim is tiled
    along grid axis 1 and reduced into an f32 VMEM accumulator.

    te_ref  : (n_row_tiles,) int32 SMEM  expert id owning row tile r
    ta_ref  : (n_row_tiles,) int32 SMEM  1 if row tile r contains real rows
    x_ref   : (TM, H)     bf16  sorted/padded token activations
    w13_ref : (1, 2*TI, H) bf16 merged gate+up slice of repacked w13[e]
    w2_ref  : (1, H, TI)  bf16  down-projection slice of w2[e]
    wr_ref  : (TM, 1)     f32   per-row router weight (0 on padding rows)
    out_ref : (TM, H)     bf16  router-weighted per-row expert output
    acc_ref : (TM, H)     f32   scratch accumulator
    """
    r = pl.program_id(0)
    i = pl.program_id(1)

    @pl.when(i == 0)
    def _init():
        acc_ref[...] = jnp.zeros_like(acc_ref)

    # Fully-padded row tiles skip both GEMMs; their x / weight block indices
    # are gated in the index_maps so no weight or activation DMA occurs.
    @pl.when(ta_ref[r] != 0)
    def _compute():
        x = x_ref[...]                                        # (TM, H) bf16
        dn = (((1,), (1,)), ((), ()))                         # contract last axes
        gu = lax.dot_general(x, w13_ref[0], dn,
                             preferred_element_type=jnp.float32)  # (TM, 2*TI)
        g = gu[:, :ti]
        u = gu[:, ti:]
        act = (g * jax.nn.sigmoid(g)) * u                     # silu_and_mul, f32
        acc_ref[...] += lax.dot_general(act.astype(x.dtype), w2_ref[0], dn,
                                        preferred_element_type=jnp.float32)

    @pl.when(i == pl.num_programs(1) - 1)
    def _finalize():
        # Router weight fused here (padding rows have weight 0), bf16 writeback.
        out_ref[...] = (acc_ref[...] * wr_ref[...]).astype(out_ref.dtype)


def moe_grouped_gemm_pallas(x_padded, w_padded, tile_expert, tile_active,
                            w13_merged, w2, *, tm, ti):
    """x_padded: (P, H) bf16 expert-sorted/padded rows.
    w13_merged: (E, 2I, H) bf16, tile i of size 2*ti = [gate tile i ; up tile i].
    w2: (E, H, I) bf16.  w_padded: (P, 1) f32 router weights (0 on padding)."""
    P, H = x_padded.shape
    E, two_I, _ = w13_merged.shape
    I = two_I // 2
    assert P % tm == 0 and I % ti == 0 and tm % 8 == 0
    n_row_tiles = P // tm
    nit = I // ti

    def x_map(r, i, te, ta):
        # Inactive tiles all alias block 0 -> x DMA skipped after the first.
        return (jnp.where(ta[r] == 0, 0, r), 0)

    def w13_map(r, i, te, ta):
        # Inactive tiles keep the last expert's last i-slice -> no re-DMA.
        return (te[r], jnp.where(ta[r] == 0, nit - 1, i), 0)

    def w2_map(r, i, te, ta):
        return (te[r], 0, jnp.where(ta[r] == 0, nit - 1, i))

    grid_spec = pltpu.PrefetchScalarGridSpec(
        num_scalar_prefetch=2,
        grid=(n_row_tiles, nit),
        in_specs=[
            pl.BlockSpec((tm, H), x_map),              # x
            pl.BlockSpec((1, 2 * ti, H), w13_map),     # merged gate+up slice
            pl.BlockSpec((1, H, ti), w2_map),          # down-proj slice
            pl.BlockSpec((tm, 1), lambda r, i, te, ta: (r, 0)),  # router weight
        ],
        out_specs=pl.BlockSpec((tm, H), lambda r, i, te, ta: (r, 0)),
        scratch_shapes=[pltpu.VMEM((tm, H), jnp.float32)],
    )
    return pl.pallas_call(
        functools.partial(_grouped_moe_kernel, ti=ti),
        out_shape=jax.ShapeDtypeStruct((P, H), jnp.bfloat16),
        grid_spec=grid_spec,
        compiler_params=pltpu.CompilerParams(
            dimension_semantics=("parallel", "arbitrary"),
            vmem_limit_bytes=_pick_vmem_limit(tm, ti, H),
        ),
    )(tile_expert, tile_active, x_padded, w13_merged, w2, w_padded)


# ------------------------------- gate (glue) ------------------------------ #
def grouped_topk(scores, n_group, topk_group, top_k, renormalize=True):
    """DeepSeek-style grouped top-k router (plain JAX glue)."""
    T, E = scores.shape
    per_group = E // n_group
    group_scores = scores.reshape(T, n_group, per_group).max(axis=-1)      # (T, G)
    _, group_idx = lax.top_k(group_scores, topk_group)                     # (T, kg)
    group_mask = jnp.sum(jax.nn.one_hot(group_idx, n_group), axis=1) > 0
    score_mask = jnp.repeat(group_mask, per_group, axis=1)                 # (T, E)
    masked = jnp.where(score_mask, scores, 0.0)
    topk_w, topk_ids = lax.top_k(masked, top_k)
    if renormalize:
        topk_w = topk_w / (jnp.sum(topk_w, axis=-1, keepdims=True) + 1e-20)
    return topk_ids.astype(jnp.int32), topk_w.astype(jnp.float32)


# ------------------------------ EPMoE forward ----------------------------- #
def epmoe_forward(hidden_states, gate_w, w13, w2, *, top_k, n_group,
                  topk_group, tm=256, ti=256):
    B, S, H = hidden_states.shape
    E, two_I, _ = w13.shape
    I = two_I // 2
    assert I % ti == 0
    hs2d = hidden_states.reshape(-1, H).astype(jnp.float32)                # (T, H)
    T = hs2d.shape[0]
    TK = T * top_k

    # --- MoEGate: router logits -> softmax -> grouped top-k (renormalized) ---
    logits = jnp.dot(hs2d, gate_w.T.astype(jnp.float32))                   # (T, E)
    scores = jax.nn.softmax(logits, axis=-1)
    topk_ids, topk_w = grouped_topk(scores, n_group, topk_group, top_k)

    # --- run_moe_ep_preproess equivalent: sort replicated rows by expert ----
    flat_e = topk_ids.reshape(-1)                                          # (TK,)
    flat_w = topk_w.reshape(-1)                                            # (TK,)
    flat_tok = jnp.arange(TK, dtype=jnp.int32) // top_k                    # (TK,)

    order = jnp.argsort(flat_e)
    e_sorted = flat_e[order]
    w_sorted = flat_w[order]
    tok_sorted = flat_tok[order]

    counts = jnp.bincount(e_sorted, length=E).astype(jnp.int32)            # (E,)
    padded_counts = ((counts + tm - 1) // tm) * tm                         # (E,)
    group_starts = jnp.concatenate(
        [jnp.zeros((1,), jnp.int32),
         jnp.cumsum(padded_counts)[:-1].astype(jnp.int32)])
    unpadded_starts = jnp.concatenate(
        [jnp.zeros((1,), jnp.int32),
         jnp.cumsum(counts)[:-1].astype(jnp.int32)])
    rank_in_group = jnp.arange(TK, dtype=jnp.int32) - unpadded_starts[e_sorted]
    dest = group_starts[e_sorted] + rank_in_group                          # (TK,) unique

    # Static padded row count: round_up(TK) + one partial tile per expert.
    P = _round_up(TK, tm) + E * tm
    n_row_tiles = P // tm

    tok_padded = jnp.zeros((P,), jnp.int32).at[dest].set(tok_sorted)
    w_padded = jnp.zeros((P,), jnp.float32).at[dest].set(w_sorted)

    # pre_reorder: gather token rows into expert-sorted, tile-padded layout.
    # TODO(synk): this gather runs in XLA; for prefill-sized T it could move
    # into the kernel via scalar-prefetched row ids + manual DMA (pl.ANY x).
    x_padded = hs2d[tok_padded].astype(jnp.bfloat16)                       # (P, H)

    # Per-row-tile metadata (scalar prefetch): owning expert + active flag.
    tile_starts = jnp.arange(n_row_tiles, dtype=jnp.int32) * tm
    group_ends = jnp.cumsum(padded_counts).astype(jnp.int32)
    total_used = group_ends[-1]
    owner = jnp.searchsorted(group_ends, tile_starts, side="right").astype(jnp.int32)
    last_expert = e_sorted[-1].astype(jnp.int32)   # inactive tiles alias its weights
    tile_active = (tile_starts < total_used).astype(jnp.int32)
    tile_expert = jnp.where(tile_active != 0,
                            jnp.minimum(owner, E - 1),
                            last_expert).astype(jnp.int32)

    # Repack w13 so gate-tile-i and up-tile-i are contiguous (one merged weight
    # stream -> single full-width MXU matmul per step).  In a real model this
    # repack is done once at load time, not per forward.
    w13b = w13.astype(jnp.bfloat16)
    w13_merged = (w13b.reshape(E, 2, I // ti, ti, H)
                  .transpose(0, 2, 1, 3, 4)
                  .reshape(E, 2 * I, H))
    w2b = w2.astype(jnp.bfloat16)

    # --- fused grouped GEMM (w13) + silu_and_mul + grouped GEMM (w2) --------
    # Router weight applied and output downcast to bf16 inside the kernel.
    out_padded = moe_grouped_gemm_pallas(
        x_padded, w_padded.reshape(P, 1), tile_expert, tile_active,
        w13_merged, w2b, tm=tm, ti=ti)

    # --- post_reorder: scatter-add back to token order (weights already fused)
    out = jnp.zeros((T, H), jnp.float32).at[tok_padded].add(
        out_padded.astype(jnp.float32))
    # TODO(synk): tp_size == 1 -> dist.all_reduce skipped.
    return out.reshape(B, S, H)


# ------------------------------- reference -------------------------------- #
def epmoe_reference(hidden_states, gate_w, w13, w2, *, top_k, n_group, topk_group):
    """Pure-JAX dense reference (same bf16 matmul inputs / f32 accumulation)."""
    B, S, H = hidden_states.shape
    hs2d = hidden_states.reshape(-1, H).astype(jnp.float32)
    logits = jnp.dot(hs2d, gate_w.T.astype(jnp.float32))
    scores = jax.nn.softmax(logits, axis=-1)
    topk_ids, topk_w = grouped_topk(scores, n_group, topk_group, top_k)
    E = w13.shape[0]
    xb = hs2d.astype(jnp.bfloat16)
    w13b = w13.astype(jnp.bfloat16)
    w2b = w2.astype(jnp.bfloat16)
    out = jnp.zeros_like(hs2d)
    for e in range(E):
        h = jnp.dot(xb, w13b[e].T, preferred_element_type=jnp.float32)
        inter = h.shape[1] // 2
        act = jax.nn.silu(h[:, :inter]) * h[:, inter:]
        y = jnp.dot(act.astype(jnp.bfloat16), w2b[e].T,
                    preferred_element_type=jnp.float32)                    # (T, H)
        w_tok = jnp.sum(jnp.where(topk_ids == e, topk_w, 0.0), axis=-1)
        out = out + w_tok[:, None] * y
    return out.reshape(B, S, H)


# ---------------------------------- main ---------------------------------- #
if __name__ == "__main__":
    # small config consistent with the module
    batch, seq = 2, 8
    hidden_size = 128
    intermediate_size = 256        # 2 intermediate tiles -> exercises reduction axis
    n_routed_experts = 8
    num_experts_per_tok = 2        # top_k
    n_group = 4
    topk_group = 2

    key = jax.random.PRNGKey(0)
    k_x, k_g, k_w13, k_w2 = jax.random.split(key, 4)

    hidden_states = jax.random.normal(
        k_x, (batch, seq, hidden_size), dtype=jnp.float32)
    gate_w = jax.random.normal(
        k_g, (n_routed_experts, hidden_size), dtype=jnp.float32) * 0.05
    w13 = jax.random.normal(
        k_w13, (n_routed_experts, 2 * intermediate_size, hidden_size),
        dtype=jnp.float32) * 0.05
    w2 = jax.random.normal(
        k_w2, (n_routed_experts, hidden_size, intermediate_size),
        dtype=jnp.float32) * 0.05

    fwd = functools.partial(
        epmoe_forward, top_k=num_experts_per_tok,
        n_group=n_group, topk_group=topk_group,
        tm=32, ti=128)   # small tiles for toy shapes; use 256/256+ at real sizes

    out = jax.jit(fwd)(hidden_states, gate_w, w13, w2)
    out = jax.block_until_ready(out)

    ref = epmoe_reference(
        hidden_states, gate_w, w13, w2,
        top_k=num_experts_per_tok, n_group=n_group, topk_group=topk_group)
    np.testing.assert_allclose(np.asarray(out), np.asarray(ref),
                               rtol=2e-2, atol=5e-3)

    print("KERNEL_OK")
</pallas_src>

<mosaic_0001>
module attributes {stable_mosaic.version = 11 : i64} {
  func.func private @main(%arg0: i32) attributes {dimension_semantics = [#tpu.dimension_semantics<core_parallel>], iteration_bounds = array<i64: 2>, tpu.core_type = #tpu.core_type<sc_scalar_subcore>, window_params = []} {
    return
  }
}

module attributes {stable_mosaic.version = 11 : i64} {
  func.func private @main(%arg0: i32) attributes {dimension_semantics = [#tpu.dimension_semantics<core_parallel>], iteration_bounds = array<i64: 2>, tpu.core_type = #tpu.core_type<sc_scalar_subcore>, window_params = []} {
    return
  }
}

module attributes {stable_mosaic.version = 11 : i64} {
  func.func @_grouped_moe_kernel(%arg0: i32, %arg1: i32, %arg2: memref<9xi32, #tpu.memory_space<smem>>, %arg3: memref<9xi32, #tpu.memory_space<smem>>, %arg4: memref<32x128xbf16, #tpu.memory_space<vmem>>, %arg5: memref<1x256x128xbf16, #tpu.memory_space<vmem>>, %arg6: memref<1x128x128xbf16, #tpu.memory_space<vmem>>, %arg7: memref<32x1xf32, #tpu.memory_space<vmem>>, %arg8: memref<32x128xbf16, #tpu.memory_space<vmem>>, %arg9: memref<32x128xf32, #tpu.memory_space<vmem>>) attributes {dimension_semantics = [#tpu.dimension_semantics<parallel>, #tpu.dimension_semantics<arbitrary>], iteration_bounds = array<i64: 9, 2>, scalar_prefetch = 2 : i64, scratch_operands = 1 : i64, tpu.core_type = #tpu.core_type<tc>, window_params = [{transform_indices = @transform_0, window_bounds = array<i64: 32, 128>}, {transform_indices = @transform_1, window_bounds = array<i64: 1, 256, 128>}, {transform_indices = @transform_2, window_bounds = array<i64: 1, 128, 128>}, {transform_indices = @transform_3, window_bounds = array<i64: 32, 1>}, {transform_indices = @transform_4, window_bounds = array<i64: 32, 128>}]} {
    %c0_i32 = arith.constant 0 : i32
    %0 = arith.cmpi eq, %arg1, %c0_i32 : i32
    %1 = arith.extui %0 : i1 to i32
    %c0_i32_0 = arith.constant 0 : i32
    %2 = arith.cmpi ne, %1, %c0_i32_0 : i32
    scf.if %2 {
      %cst = arith.constant 0.000000e+00 : f32
      %11 = vector.broadcast %cst : f32 to vector<32x128xf32>
      %c0 = arith.constant 0 : index
      %c0_4 = arith.constant 0 : index
      %12 = vector.load %arg9[%c0, %c0_4] : memref<32x128xf32, #tpu.memory_space<vmem>>, vector<32x128xf32>
      tpu.vector_store %arg9[%c0, %c0_4], %11 {strides = array<i32>} : memref<32x128xf32, #tpu.memory_space<vmem>>, vector<32x128xf32>,
    } else {
    }
    %3 = arith.index_cast %arg0 : i32 to index
    %4 = memref.load %arg3[%3] : memref<9xi32, #tpu.memory_space<smem>>
    %c0_i32_1 = arith.constant 0 : i32
    %5 = arith.cmpi ne, %4, %c0_i32_1 : i32
    %6 = arith.extui %5 : i1 to i32
    %c0_i32_2 = arith.constant 0 : i32
    %7 = arith.cmpi ne, %6, %c0_i32_2 : i32
    scf.if %7 {
      %c0 = arith.constant 0 : index
      %c0_4 = arith.constant 0 : index
      %11 = vector.load %arg4[%c0, %c0_4] : memref<32x128xbf16, #tpu.memory_space<vmem>>, vector<32x128xbf16>
      %c0_5 = arith.constant 0 : index
      %c0_6 = arith.constant 0 : index
      %c0_7 = arith.constant 0 : index
      %12 = vector.load %arg5[%c0_5, %c0_6, %c0_7] : memref<1x256x128xbf16, #tpu.memory_space<vmem>>, vector<1x256x128xbf16>
      %13 = vector.shape_cast %12 : vector<1x256x128xbf16> to vector<256x128xbf16>
      %cst = arith.constant dense<0.000000e+00> : vector<32x256xf32>
      %14 = tpu.matmul %11, %13, %cst {dimension_numbers = #tpu.dot_dimension_numbers<[1], [1], [0], [0], [0, 0, 1, 0], [], []>} : vector<32x128xbf16>, vector<256x128xbf16>, vector<32x256xf32> -> vector<32x256xf32>
      %15 = vector.extract_strided_slice %14 {offsets = [0, 0], sizes = [32, 128], strides = [1, 1]} : vector<32x256xf32> to vector<32x128xf32>
      %16 = vector.extract_strided_slice %14 {offsets = [0, 128], sizes = [32, 128], strides = [1, 1]} : vector<32x256xf32> to vector<32x128xf32>
      %17 = arith.negf %15 : vector<32x128xf32>
      %18 = math.exp %17 : vector<32x128xf32>
      %cst_8 = arith.constant 1.000000e+00 : f32
      %19 = vector.broadcast %cst_8 : f32 to vector<32x128xf32>
      %20 = arith.addf %19, %18 : vector<32x128xf32>
      %21 = arith.divf %19, %20 : vector<32x128xf32>
      %22 = arith.mulf %15, %21 : vector<32x128xf32>
      %23 = arith.mulf %22, %16 : vector<32x128xf32>
      %c0_9 = arith.constant 0 : index
      %c0_10 = arith.constant 0 : index
      %24 = vector.load %arg9[%c0_9, %c0_10] : memref<32x128xf32, #tpu.memory_space<vmem>>, vector<32x128xf32>
      %25 = arith.truncf %23 : vector<32x128xf32> to vector<32x128xbf16>
      %c0_11 = arith.constant 0 : index
      %c0_12 = arith.constant 0 : index
      %c0_13 = arith.constant 0 : index
      %26 = vector.load %arg6[%c0_11, %c0_12, %c0_13] : memref<1x128x128xbf16, #tpu.memory_space<vmem>>, vector<1x128x128xbf16>
      %27 = vector.shape_cast %26 : vector<1x128x128xbf16> to vector<128x128xbf16>
      %cst_14 = arith.constant dense<0.000000e+00> : vector<32x128xf32>
      %28 = tpu.matmul %25, %27, %cst_14 {dimension_numbers = #tpu.dot_dimension_numbers<[1], [1], [0], [0], [0, 0, 1, 0], [], []>} : vector<32x128xbf16>, vector<128x128xbf16>, vector<32x128xf32> -> vector<32x128xf32>
      %29 = arith.addf %24, %28 : vector<32x128xf32>
      %c0_15 = arith.constant 0 : index
      %c0_16 = arith.constant 0 : index
      %30 = vector.load %arg9[%c0_15, %c0_16] : memref<32x128xf32, #tpu.memory_space<vmem>>, vector<32x128xf32>
      tpu.vector_store %arg9[%c0_15, %c0_16], %29 {strides = array<i32>} : memref<32x128xf32, #tpu.memory_space<vmem>>, vector<32x128xf32>,
    } else {
    }
    %c1_i32 = arith.constant 1 : i32
    %8 = arith.cmpi eq, %arg1, %c1_i32 : i32
    %9 = arith.extui %8 : i1 to i32
    %c0_i32_3 = arith.constant 0 : i32
    %10 = arith.cmpi ne, %9, %c0_i32_3 : i32
    scf.if %10 {
      %c0 = arith.constant 0 : index
      %c0_4 = arith.constant 0 : index
      %11 = vector.load %arg9[%c0, %c0_4] : memref<32x128xf32, #tpu.memory_space<vmem>>, vector<32x128xf32>
      %c0_5 = arith.constant 0 : index
      %c0_6 = arith.constant 0 : index
      %12 = vector.load %arg7[%c0_5, %c0_6] : memref<32x1xf32, #tpu.memory_space<vmem>>, vector<32x1xf32>
      %13 = vector.broadcast %12 : vector<32x1xf32> to vector<32x128xf32>
      %14 = arith.mulf %11, %13 : vector<32x128xf32>
      %15 = arith.truncf %14 : vector<32x128xf32> to vector<32x128xbf16>
      %c0_7 = arith.constant 0 : index
      %c0_8 = arith.constant 0 : index
      %16 = vector.load %arg8[%c0_7, %c0_8] : memref<32x128xbf16, #tpu.memory_space<vmem>>, vector<32x128xbf16>
      tpu.vector_store %arg8[%c0_7, %c0_8], %15 {strides = array<i32>} : memref<32x128xbf16, #tpu.memory_space<vmem>>, vector<32x128xbf16>,
    } else {
    }
    return
  }
  func.func @transform_0(%arg0: i32, %arg1: i32, %arg2: memref<9xi32, #tpu.memory_space<smem>>, %arg3: memref<9xi32, #tpu.memory_space<smem>>) -> (i32, i32) {
    %0 = arith.index_cast %arg0 : i32 to index
    %1 = memref.load %arg3[%0] : memref<9xi32, #tpu.memory_space<smem>>
    %c0_i32 = arith.constant 0 : i32
    %2 = arith.cmpi eq, %1, %c0_i32 : i32
    %c0_i32_0 = arith.constant 0 : i32
    %3 = arith.select %2, %c0_i32_0, %arg0 : i32
    %c0_i32_1 = arith.constant 0 : i32
    %c0_i32_2 = arith.constant 0 : i32
    return %3, %c0_i32_1 : i32, i32
  }
  func.func @transform_1(%arg0: i32, %arg1: i32, %arg2: memref<9xi32, #tpu.memory_space<smem>>, %arg3: memref<9xi32, #tpu.memory_space<smem>>) -> (i32, i32, i32) {
    %0 = arith.index_cast %arg0 : i32 to index
    %1 = memref.load %arg2[%0] : memref<9xi32, #tpu.memory_space<smem>>
    %2 = arith.index_cast %arg0 : i32 to index
    %3 = memref.load %arg3[%2] : memref<9xi32, #tpu.memory_space<smem>>
    %c0_i32 = arith.constant 0 : i32
    %4 = arith.cmpi eq, %3, %c0_i32 : i32
    %c1_i32 = arith.constant 1 : i32
    %5 = arith.select %4, %c1_i32, %arg1 : i32
    %c0_i32_0 = arith.constant 0 : i32
    %c0_i32_1 = arith.constant 0 : i32
    return %1, %5, %c0_i32_0 : i32, i32, i32
  }
  func.func @transform_2(%arg0: i32, %arg1: i32, %arg2: memref<9xi32, #tpu.memory_space<smem>>, %arg3: memref<9xi32, #tpu.memory_space<smem>>) -> (i32, i32, i32) {
    %0 = arith.index_cast %arg0 : i32 to index
    %1 = memref.load %arg2[%0] : memref<9xi32, #tpu.memory_space<smem>>
    %2 = arith.index_cast %arg0 : i32 to index
    %3 = memref.load %arg3[%2] : memref<9xi32, #tpu.memory_space<smem>>
    %c0_i32 = arith.constant 0 : i32
    %4 = arith.cmpi eq, %3, %c0_i32 : i32
    %c1_i32 = arith.constant 1 : i32
    %5 = arith.select %4, %c1_i32, %arg1 : i32
    %c0_i32_0 = arith.constant 0 : i32
    %c0_i32_1 = arith.constant 0 : i32
    return %1, %c0_i32_0, %5 : i32, i32, i32
  }
  func.func @transform_3(%arg0: i32, %arg1: i32, %arg2: memref<9xi32, #tpu.memory_space<smem>>, %arg3: memref<9xi32, #tpu.memory_space<smem>>) -> (i32, i32) {
    %c0_i32 = arith.constant 0 : i32
    %c0_i32_0 = arith.constant 0 : i32
    return %arg0, %c0_i32 : i32, i32
  }
  func.func @transform_4(%arg0: i32, %arg1: i32, %arg2: memref<9xi32, #tpu.memory_space<smem>>, %arg3: memref<9xi32, #tpu.memory_space<smem>>) -> (i32, i32) {
    %c0_i32 = arith.constant 0 : i32
    %c0_i32_0 = arith.constant 0 : i32
    return %arg0, %c0_i32 : i32, i32
  }
}

</mosaic_0001>

<llo_original>
// kernel: custom-call
$region0: #{custom-call}
  %s0 = inlined_call_operand.vmem [shape: u32[9], index: 0, kind: output, shape index: {}]

// kernel: epmoe_forward.1
$region0: #{epmoe_forward.1}
  #allocation0 [shape = 'u32[]', space=smem, size = 0x4, offset = 0x4, fixed_abs, tag = 'smem constant byte address 0x4 - core index']
  #allocation1 [shape = 'u32[144,128]{1,0:T(1,128)}', space=vmem, size = 0x12000, scoped, tag = 'internal scratch']
  #allocation2 [shape = 'f32[32,128]{1,0:T(8,128)}', space=vmem, size = 0x4000, scoped, tag = 'scratch operand']
  #allocation3 [shape = 's32[1]{0}', space=sflag, size = 0x4, scoped, tag = 'scoped memory for epmoe_forward.1']
  #allocation4 [shape = 'u8[512]{0}', space=smem, size = 0x200, scoped, tag = 'prefetched SMEM operand 0']
  #allocation5 [shape = 'u8[512]{0}', space=smem, size = 0x200, scoped, tag = 'prefetched SMEM operand 1']
  %s0 = inlined_call_operand.vmem [shape: s32[9], index: 0, kind: input, shape index: {}]
  %s1 = inlined_call_operand.vmem [shape: s32[9], index: 1, kind: input, shape index: {}]
  %s2 = inlined_call_operand.vmem [shape: bf16[288,128], index: 2, kind: input, shape index: {}]
  %s3 = inlined_call_operand.vmem [shape: bf16[8,512,128], index: 3, kind: input, shape index: {}]
  %s4 = inlined_call_operand.vmem [shape: bf16[8,128,256], index: 4, kind: input, shape index: {}]
  %s5 = inlined_call_operand.vmem [shape: f32[288,1], index: 5, kind: input, shape index: {}]
  %s6 = inlined_call_operand.vmem [shape: bf16[288,128], index: 6, kind: output, shape index: {}]
  %s7 = sld [smem:[#allocation0]]
  $region102: #{epmoe_forward.1} parent=0
    _
  %s9 = ssub.s32 1, %s7
  %s10 = scalar_select 0, %s9, %s7
  %s11 = sshll.u32 %s0, 4
  %s12 = int_to_ptr.vmem [resolvable:$true] %s11
  %14 = dma.vmem_to_smem %s12, 16, [#allocation4], [#allocation3]
  %s15 = sshll.u32 %s1, 4
  %s16 = int_to_ptr.vmem [resolvable:$true] %s15
  %18 = dma.vmem_to_smem %s16, 16, [#allocation5], [#allocation3]
  %19 = dma.done [#allocation3], 32
  %20 = sfence
  $region1: #{epmoe_forward.1} parent=0
    #allocation6 [shape = 'u8[65536]{0}', space=vmem, size = 0x10000, scoped, tag = 'input window, operand 4']
    loop: start=0, step=1, limit=20
    $region2: #{epmoe_forward.1} parent=1 // loop_pre_header
      _
    $region3: #{epmoe_forward.1} parent=1 // loop_header
      %s22 = sphi 0, %s26
      %p23 = scmp.ge.s32.totalorder %s22, 20
      %s29 = sphi 0, %s41
      %s30 = sphi 0, %s37
      %s31 = sphi 0, %s29
      %s32 = sphi 0, %s30
      %s33 = sphi 0, %s31
      %s34 = sphi 0, %s32
      %s50 = sphi 0, %s52
      %s53 = sphi 0, %s50
      %s54 = sphi 0, %s53
      %s70 = sphi 0, %s54
      %s86 = sphi 0, %s88
      %s89 = sphi 0, %s86
      %s90 = sphi 0, %s89
      %s106 = sphi 0, %s90
      %s122 = sphi 0, %s124
      %s125 = sphi 0, %s122
      %s126 = sphi 0, %s125
      %s142 = sphi 0, %s126
      %s148 = sphi 0, %s150
      %s151 = sphi 0, %s148
      %s152 = sphi 0, %s151
      %s168 = sphi 0, %s152
      %s174 = sphi 0, %s176
      %s177 = sphi 0, %s174
      %s178 = sphi 0, %s177
      %s194 = sphi 0, %s178
    $region4: #{epmoe_forward.1} parent=1 // loop_header_branch
      %25 = sbr.rel (%p23) target = $region8
    $region5: #{epmoe_forward.1} parent=1 // loop_body
      %s27 = ssub.s32 %s22, 1
      %s28 = ssub.s32 %s22, 2
      %s35 = sadd.s32 1, %s30
      %p36 = scmp.ge.s32.totalorder %s35, 2
      %s37 = scalar_select %p36, 0, %s35
      %s38 = sadd.s32 1, %s29
      %s39 = scalar_select %p36, %s38, %s29
      %p40 = scmp.ge.s32.totalorder %s39, 9
      %s41 = scalar_select %p40, 0, %s39
      %s42 = sld [smem:[#allocation5 + %s29]]
      %p43 = scmp.eq.s32.totalorder %s42, 0
      %s44 = scalar_select %p43, 0, %s29
      %s45 = sld [smem:[#allocation5 + %s41]]
      %p46 = scmp.eq.s32.totalorder %s45, 0
      %s47 = scalar_select %p46, 0, %s41
      %s48 = ssub.s32 %s44, %s47
      %p49 = scmp.eq.s32.totalorder %s48, 0
      %s51 = sadd.s32 %s50, 1
      %s52 = scalar_select %p49, %s50, %s51
      %p55 = pneg %p49
      %p56 = scmp.eq.s32.totalorder %s22, 17
      %p57 = por %p55, %p56
      %p58 = scmp.ne.s32.totalorder %s50, %s53
      %p59 = scmp.eq.s32.totalorder %s22, 0
      %p60 = por %p58, %p59
      %p61 = scmp.ne.s32.totalorder %s50, %s53
      %p62 = scmp.eq.s32.totalorder %s27, 17
      %p63 = por %p61, %p62
      %p64 = scmp.ne.s32.totalorder %s53, %s54
      %p65 = scmp.eq.s32.totalorder %s27, 0
      %p66 = por %p64, %p65
      %p67 = scmp.ne.s32.totalorder %s53, %s54
      %p68 = scmp.eq.s32.totalorder %s28, 17
      %p69 = por %p67, %p68
      %p71 = scmp.ne.s32.totalorder %s54, %s70
      %p72 = scmp.eq.s32.totalorder %s28, 0
      %p73 = por %p71, %p72
      %s74 = sld [smem:[#allocation4 + %s29]]
      %s75 = sld [smem:[#allocation5 + %s29]]
      %p76 = scmp.eq.s32.totalorder %s75, 0
      %s77 = scalar_select %p76, 1, %s30
      %s78 = sld [smem:[#allocation4 + %s41]]
      %s79 = sld [smem:[#allocation5 + %s41]]
      %p80 = scmp.eq.s32.totalorder %s79, 0
      %s81 = scalar_select %p80, 1, %s37
      %s82 = ssub.s32 %s74, %s78
      %s83 = ssub.s32 %s77, %s81
      %s84 = sor.u32 %s82, %s83
      %p85 = scmp.eq.s32.totalorder %s84, 0
      %s87 = sadd.s32 %s86, 1
      %s88 = scalar_select %p85, %s86, %s87
      %p91 = pneg %p85
      %p92 = scmp.eq.s32.totalorder %s22, 17
      %p93 = por %p91, %p92
      %p94 = scmp.ne.s32.totalorder %s86, %s89
      %p95 = scmp.eq.s32.totalorder %s22, 0
      %p96 = por %p94, %p95
      %p97 = scmp.ne.s32.totalorder %s86, %s89
      %p98 = scmp.eq.s32.totalorder %s27, 17
      %p99 = por %p97, %p98
      %p100 = scmp.ne.s32.totalorder %s89, %s90
      %p101 = scmp.eq.s32.totalorder %s27, 0
      %p102 = por %p100, %p101
      %p103 = scmp.ne.s32.totalorder %s89, %s90
      %p104 = scmp.eq.s32.totalorder %s28, 17
      %p105 = por %p103, %p104
      %p107 = scmp.ne.s32.totalorder %s90, %s106
      %p108 = scmp.eq.s32.totalorder %s28, 0
      %p109 = por %p107, %p108
      %s110 = sld [smem:[#allocation4 + %s29]]
      %s111 = sld [smem:[#allocation5 + %s29]]
      %p112 = scmp.eq.s32.totalorder %s111, 0
      %s113 = scalar_select %p112, 1, %s30
      %s114 = sld [smem:[#allocation4 + %s41]]
      %s115 = sld [smem:[#allocation5 + %s41]]
      %p116 = scmp.eq.s32.totalorder %s115, 0
      %s117 = scalar_select %p116, 1, %s37
      %s118 = ssub.s32 %s110, %s114
      %s119 = ssub.s32 %s113, %s117
      %s120 = sor.u32 %s118, %s119
      %p121 = scmp.eq.s32.totalorder %s120, 0
      %s123 = sadd.s32 %s122, 1
      %s124 = scalar_select %p121, %s122, %s123
      %p127 = pneg %p121
      %p128 = scmp.eq.s32.totalorder %s22, 17
      %p129 = por %p127, %p128
      %p130 = scmp.ne.s32.totalorder %s122, %s125
      %p131 = scmp.eq.s32.totalorder %s22, 0
      %p132 = por %p130, %p131
      %p133 = scmp.ne.s32.totalorder %s122, %s125
      %p134 = scmp.eq.s32.totalorder %s27, 17
      %p135 = por %p133, %p134
      %p136 = scmp.ne.s32.totalorder %s125, %s126
      %p137 = scmp.eq.s32.totalorder %s27, 0
      %p138 = por %p136, %p137
      %p139 = scmp.ne.s32.totalorder %s125, %s126
      %p140 = scmp.eq.s32.totalorder %s28, 17
      %p141 = por %p139, %p140
      %p143 = scmp.ne.s32.totalorder %s126, %s142
      %p144 = scmp.eq.s32.totalorder %s28, 0
      %p145 = por %p143, %p144
      %s146 = ssub.s32 %s29, %s41
      %p147 = scmp.eq.s32.totalorder %s146, 0
      %s149 = sadd.s32 %s148, 1
      %s150 = scalar_select %p147, %s148, %s149
      %p153 = pneg %p147
      %p154 = scmp.eq.s32.totalorder %s22, 17
      %p155 = por %p153, %p154
      %p156 = scmp.ne.s32.totalorder %s148, %s151
      %p157 = scmp.eq.s32.totalorder %s22, 0
      %p158 = por %p156, %p157
      %p159 = scmp.ne.s32.totalorder %s148, %s151
      %p160 = scmp.eq.s32.totalorder %s27, 17
      %p161 = por %p159, %p160
      %p162 = scmp.ne.s32.totalorder %s151, %s152
      %p163 = scmp.eq.s32.totalorder %s27, 0
      %p164 = por %p162, %p163
      %p165 = scmp.ne.s32.totalorder %s151, %s152
      %p166 = scmp.eq.s32.totalorder %s28, 17
      %p167 = por %p165, %p166
      %p169 = scmp.ne.s32.totalorder %s152, %s168
      %p170 = scmp.eq.s32.totalorder %s28, 0
      %p171 = por %p169, %p170
      %s172 = ssub.s32 %s29, %s41
      %p173 = scmp.eq.s32.totalorder %s172, 0
      %s175 = sadd.s32 %s174, 1
      %s176 = scalar_select %p173, %s174, %s175
      %p179 = pneg %p173
      %p180 = scmp.eq.s32.totalorder %s22, 17
      %p181 = por %p179, %p180
      %p182 = scmp.ne.s32.totalorder %s174, %s177
      %p183 = scmp.eq.s32.totalorder %s22, 0
      %p184 = por %p182, %p183
      %p185 = scmp.ne.s32.totalorder %s174, %s177
      %p186 = scmp.eq.s32.totalorder %s27, 17
      %p187 = por %p185, %p186
      %p188 = scmp.ne.s32.totalorder %s177, %s178
      %p189 = scmp.eq.s32.totalorder %s27, 0
      %p190 = por %p188, %p189
      %p191 = scmp.ne.s32.totalorder %s177, %s178
      %p192 = scmp.eq.s32.totalorder %s28, 17
      %p193 = por %p191, %p192
      %p195 = scmp.ne.s32.totalorder %s178, %s194
      %p196 = scmp.eq.s32.totalorder %s28, 0
      %p197 = por %p195, %p196
      %p198 = scmp.le.s32.totalorder 1, %s22
      %p199 = scmp.lt.s32.totalorder %s22, 19
      %p200 = pnand %p198, %p199
      %p201 = pneg %p200
      // Predicated region
      $region9: #{epmoe_forward.1} parent=5 // pred_check
        _
      $region10: #{epmoe_forward.1} parent=5 // pred_check_branch
        %203 = sbr.rel (%p200) target = $region12
      $region11: #{epmoe_forward.1} parent=5 // pred_region
        %s204 = ssub.s32 %s22, 1
      $region12: #{epmoe_forward.1} parent=5 // pred_fallthru
        _
      %p205 = scmp.lt.s32.totalorder %s22, 18
      // Predicated region
      $region13: #{epmoe_forward.1} parent=5 // pred_check
        %p206 = pneg %p205
      $region14: #{epmoe_forward.1} parent=5 // pred_check_branch
        %208 = sbr.rel (%p206) target = $region16
      $region15: #{epmoe_forward.1} parent=5 // pred_region
        // Predicated region
        $region17: #{epmoe_forward.1} parent=15 // pred_check
          %p209 = pneg %p60
        $region18: #{epmoe_forward.1} parent=15 // pred_check_branch
          %211 = sbr.rel (%p209) target = $region20
        $region19: #{epmoe_forward.1} parent=15 // pred_region
          %s212 = sld [smem:[#allocation5 + %s29]]
          %p213 = scmp.eq.s32.totalorder %s212, 0
          %s214 = scalar_select %p213, 0, %s29
          %s215 = smul.u32 4, %s214
          %p216 = scmp.lt.s32.totalorder %s215, 35
          %s217 = scalar_select %p216, %s215, 35
          %s218 = smul.addr %s217, 4
          %s219 = scalar_lea.vmem %s2, %s218
          %s220 = sld [smem:[#allocation5 + %s29]]
          %p221 = scmp.eq.s32.totalorder %s220, 0
          %s222 = scalar_select %p221, 0, %s29
          %s223 = smul.u32 4, %s222
        $region20: #{epmoe_forward.1} parent=15 // pred_fallthru
          _
        // Predicated region
        $region21: #{epmoe_forward.1} parent=15 // pred_check
          %p224 = pneg %p96
        $region22: #{epmoe_forward.1} parent=15 // pred_check_branch
          %226 = sbr.rel (%p224) target = $region24
        $region23: #{epmoe_forward.1} parent=15 // pred_region
          %s227 = sld [smem:[#allocation4 + %s29]]
          %s228 = sld [smem:[#allocation5 + %s29]]
          %p229 = scmp.eq.s32.totalorder %s228, 0
          %s230 = scalar_select %p229, 1, %s30
          %s231 = smul.u32 32, %s230
          %p232 = scmp.lt.s32.totalorder %s227, 7
          %s233 = scalar_select %p232, %s227, 7
          %p234 = scmp.lt.s32.totalorder %s231, 63
          %s235 = scalar_select %p234, %s231, 63
          %s236 = smul.addr %s233, 64
          %s237 = sadd.s32 %s235, %s236
          %s238 = smul.addr %s237, 4
          %s239 = scalar_lea.vmem %s3, %s238
          %s240 = sld [smem:[#allocation4 + %s29]]
          %s241 = sld [smem:[#allocation5 + %s29]]
          %p242 = scmp.eq.s32.totalorder %s241, 0
          %s243 = scalar_select %p242, 1, %s30
          %s244 = smul.u32 32, %s243
        $region24: #{epmoe_forward.1} parent=15 // pred_fallthru
          _
        // Predicated region
        $region25: #{epmoe_forward.1} parent=15 // pred_check
          %p245 = pneg %p132
        $region26: #{epmoe_forward.1} parent=15 // pred_check_branch
          %247 = sbr.rel (%p245) target = $region28
        $region27: #{epmoe_forward.1} parent=15 // pred_region
          %s248 = sand.u32 %s122, 1
          %s249 = sand.u32 %s122, 1
          %s250 = smul.addr %s249, 64
          %s251 = scalar_lea.vmem [#allocation6], %s250
          %s252 = sld [smem:[#allocation4 + %s29]]
          %s253 = sld [smem:[#allocation5 + %s29]]
          %p254 = scmp.eq.s32.totalorder %s253, 0
          %s255 = scalar_select %p254, 1, %s30
          %s256 = smul.addr %s252, 32
          %s257 = sadd.s32 %s255, %s256
          %s258 = smul.addr %s257, 4
          %s259 = scalar_lea.vmem %s4, %s258
          // Predicated region
          $region29: #{epmoe_forward.1} parent=27 // pred_check
            _
          $region30: #{epmoe_forward.1} parent=27 // pred_check_branch
            %261 = sbr.rel (0) target = $region32
          $region31: #{epmoe_forward.1} parent=27 // pred_region
            // Predicated region
            $region33: #{epmoe_forward.1} parent=31 // pred_check
              _
            $region34: #{epmoe_forward.1} parent=31 // pred_check_branch
              %263 = sbr.rel target = $region36
            $region35: #{epmoe_forward.1} parent=31 // pred_region
              // Predicated region
              $region48: #{epmoe_forward.1} parent=35 // pred_check
                _
              $region49: #{epmoe_forward.1} parent=35 // pred_check_branch
                %309 = sbr.rel (0) target = $region51
              $region50: #{epmoe_forward.1} parent=35 // pred_region
                loop: start=0, step=1, limit=1
                $region52: #{epmoe_forward.1} parent=50 // loop_pre_header
                  _
                $region53: #{epmoe_forward.1} parent=50 // loop_header
                  %s311 = sphi 0, %s315
                  %p312 = scmp.ge.s32.totalorder %s311, 1
                  %s316 = sphi %s259, %s259
                  %s317 = sphi %s251, %s251
                $region54: #{epmoe_forward.1} parent=50 // loop_header_branch
                  %314 = sbr.rel (%p312) target = $region58
                $region55: #{epmoe_forward.1} parent=50 // loop_body
                  _
                $region56: #{epmoe_forward.1} parent=50 // loop_footer
                  %s315 = sadd.s32 1, %s311
                $region57: #{epmoe_forward.1} parent=50 // loop_footer_branch
                  %310 = sbr.rel target = $region53
                $region58: #{epmoe_forward.1} parent=50 // loop_exit
                  _
                %s319 = ssub.s32 16, 1
                loop: start=0, step=1, limit=1
                $region59: #{epmoe_forward.1} parent=50 // loop_pre_header
                  _
                $region60: #{epmoe_forward.1} parent=50 // loop_header
                  %s321 = sphi 0, %s325
                  %p322 = scmp.ge.s32.totalorder %s321, 1
                  %s326 = sphi %s259, %s259
                  %s327 = sphi %s251, %s251
                $region61: #{epmoe_forward.1} parent=50 // loop_header_branch
                  %324 = sbr.rel (%p322) target = $region65
                $region62: #{epmoe_forward.1} parent=50 // loop_body
                  %v328 = vld [vmem:[%s326] sm:%s319]
                  %329 = vst [vmem:[%s327] sm:%s319] %v328
                  %v330 = vld [vmem:[%s326 + $0x8] sm:%s319]
                  %331 = vst [vmem:[%s327 + $0x4] sm:%s319] %v330
                  %v332 = vld [vmem:[%s326 + $0x10] sm:%s319]
                  %333 = vst [vmem:[%s327 + $0x8] sm:%s319] %v332
                  %v334 = vld [vmem:[%s326 + $0x18] sm:%s319]
                  %335 = vst [vmem:[%s327 + $0xc] sm:%s319] %v334
                  %v336 = vld [vmem:[%s326 + $0x20] sm:%s319]
                  %337 = vst [vmem:[%s327 + $0x10] sm:%s319] %v336
                  %v338 = vld [vmem:[%s326 + $0x28] sm:%s319]
                  %339 = vst [vmem:[%s327 + $0x14] sm:%s319] %v338
                  %v340 = vld [vmem:[%s326 + $0x30] sm:%s319]
                  %341 = vst [vmem:[%s327 + $0x18] sm:%s319] %v340
                  %v342 = vld [vmem:[%s326 + $0x38] sm:%s319]
                  %343 = vst [vmem:[%s327 + $0x1c] sm:%s319] %v342
                  %v344 = vld [vmem:[%s326 + $0x40] sm:%s319]
                  %345 = vst [vmem:[%s327 + $0x20] sm:%s319] %v344
                  %v346 = vld [vmem:[%s326 + $0x48] sm:%s319]
                  %347 = vst [vmem:[%s327 + $0x24] sm:%s319] %v346
                  %v348 = vld [vmem:[%s326 + $0x50] sm:%s319]
                  %349 = vst [vmem:[%s327 + $0x28] sm:%s319] %v348
                  %v350 = vld [vmem:[%s326 + $0x58] sm:%s319]
                  %351 = vst [vmem:[%s327 + $0x2c] sm:%s319] %v350
                  %v352 = vld [vmem:[%s326 + $0x60] sm:%s319]
                  %353 = vst [vmem:[%s327 + $0x30] sm:%s319] %v352
                  %v354 = vld [vmem:[%s326 + $0x68] sm:%s319]
                  %355 = vst [vmem:[%s327 + $0x34] sm:%s319] %v354
                  %v356 = vld [vmem:[%s326 + $0x70] sm:%s319]
                  %357 = vst [vmem:[%s327 + $0x38] sm:%s319] %v356
                  %v358 = vld [vmem:[%s326 + $0x78] sm:%s319]
                  %359 = vst [vmem:[%s327 + $0x3c] sm:%s319] %v358
                $region63: #{epmoe_forward.1} parent=50 // loop_footer
                  %s325 = sadd.s32 1, %s321
                $region64: #{epmoe_forward.1} parent=50 // loop_footer_branch
                  %320 = sbr.rel target = $region60
                $region65: #{epmoe_forward.1} parent=50 // loop_exit
                  _
              $region51: #{epmoe_forward.1} parent=35 // pred_fallthru
                _
            $region36: #{epmoe_forward.1} parent=31 // pred_fallthru
              _
            // Predicated region
            $region37: #{epmoe_forward.1} parent=31 // pred_check
              _
            $region38: #{epmoe_forward.1} parent=31 // pred_check_branch
              %265 = sbr.rel (0) target = $region40
            $region39: #{epmoe_forward.1} parent=31 // pred_region
              %s267 = ssub.s32 16, 1
              loop: start=0, step=1, limit=1
              $region41: #{epmoe_forward.1} parent=39 // loop_pre_header
                _
              $region42: #{epmoe_forward.1} parent=39 // loop_header
                %s269 = sphi 0, %s273
                %p270 = scmp.ge.s32.totalorder %s269, 1
                %s274 = sphi %s259, %s259
                %s275 = sphi %s251, %s251
              $region43: #{epmoe_forward.1} parent=39 // loop_header_branch
                %272 = sbr.rel (%p270) target = $region47
              $region44: #{epmoe_forward.1} parent=39 // loop_body
                %v276 = vld [vmem:[%s274] sm:%s267]
                %277 = vst [vmem:[%s275] sm:%s267] %v276
                %v278 = vld [vmem:[%s274 + $0x8] sm:%s267]
                %279 = vst [vmem:[%s275 + $0x4] sm:%s267] %v278
                %v280 = vld [vmem:[%s274 + $0x10] sm:%s267]
                %281 = vst [vmem:[%s275 + $0x8] sm:%s267] %v280
                %v282 = vld [vmem:[%s274 + $0x18] sm:%s267]
                %283 = vst [vmem:[%s275 + $0xc] sm:%s267] %v282
                %v284 = vld [vmem:[%s274 + $0x20] sm:%s267]
                %285 = vst [vmem:[%s275 + $0x10] sm:%s267] %v284
                %v286 = vld [vmem:[%s274 + $0x28] sm:%s267]
                %287 = vst [vmem:[%s275 + $0x14] sm:%s267] %v286
                %v288 = vld [vmem:[%s274 + $0x30] sm:%s267]
                %289 = vst [vmem:[%s275 + $0x18] sm:%s267] %v288
                %v290 = vld [vmem:[%s274 + $0x38] sm:%s267]
                %291 = vst [vmem:[%s275 + $0x1c] sm:%s267] %v290
                %v292 = vld [vmem:[%s274 + $0x40] sm:%s267]
                %293 = vst [vmem:[%s275 + $0x20] sm:%s267] %v292
                %v294 = vld [vmem:[%s274 + $0x48] sm:%s267]
                %295 = vst [vmem:[%s275 + $0x24] sm:%s267] %v294
                %v296 = vld [vmem:[%s274 + $0x50] sm:%s267]
                %297 = vst [vmem:[%s275 + $0x28] sm:%s267] %v296
                %v298 = vld [vmem:[%s274 + $0x58] sm:%s267]
                %299 = vst [vmem:[%s275 + $0x2c] sm:%s267] %v298
                %v300 = vld [vmem:[%s274 + $0x60] sm:%s267]
                %301 = vst [vmem:[%s275 + $0x30] sm:%s267] %v300
                %v302 = vld [vmem:[%s274 + $0x68] sm:%s267]
                %303 = vst [vmem:[%s275 + $0x34] sm:%s267] %v302
                %v304 = vld [vmem:[%s274 + $0x70] sm:%s267]
                %305 = vst [vmem:[%s275 + $0x38] sm:%s267] %v304
                %v306 = vld [vmem:[%s274 + $0x78] sm:%s267]
                %307 = vst [vmem:[%s275 + $0x3c] sm:%s267] %v306
              $region45: #{epmoe_forward.1} parent=39 // loop_footer
                %s273 = sadd.s32 1, %s269
              $region46: #{epmoe_forward.1} parent=39 // loop_footer_branch
                %268 = sbr.rel target = $region42
              $region47: #{epmoe_forward.1} parent=39 // loop_exit
                _
            $region40: #{epmoe_forward.1} parent=31 // pred_fallthru
              _
          $region32: #{epmoe_forward.1} parent=27 // pred_fallthru
            _
          %360 = vnop
        $region28: #{epmoe_forward.1} parent=15 // pred_fallthru
          _
        // Predicated region
        $region66: #{epmoe_forward.1} parent=15 // pred_check
          %p361 = pneg %p158
        $region67: #{epmoe_forward.1} parent=15 // pred_check_branch
          %363 = sbr.rel (%p361) target = $region69
        $region68: #{epmoe_forward.1} parent=15 // pred_region
          %s364 = smul.u32 4, %s29
          %p365 = scmp.lt.s32.totalorder %s364, 35
          %s366 = scalar_select %p365, %s364, 35
          %s367 = smul.addr %s366, 8
          %s368 = scalar_lea.vmem %s5, %s367
          %s369 = smul.u32 4, %s29
        $region69: #{epmoe_forward.1} parent=15 // pred_fallthru
          _
      $region16: #{epmoe_forward.1} parent=5 // pred_fallthru
        _
      %p370 = scmp.le.s32.totalorder 1, %s22
      %p371 = scmp.lt.s32.totalorder %s22, 19
      %p372 = pnand %p370, %p371
      %p373 = pneg %p372
      // Predicated region
      $region70: #{epmoe_forward.1} parent=5 // pred_check
        _
      $region71: #{epmoe_forward.1} parent=5 // pred_check_branch
        %375 = sbr.rel (%p372) target = $region73
      $region72: #{epmoe_forward.1} parent=5 // pred_region
        %s376 = ssub.s32 %s22, 1
        %s377 = sand.u32 %s125, 1
        %s378 = sand.u32 %s125, 1
        %s379 = smul.addr %s378, 64
        %s380 = scalar_lea.vmem [#allocation6], %s379
        // Predicated region
        $region74: #{epmoe_forward.1} parent=72 // pred_check
          %p381 = pneg %p138
        $region75: #{epmoe_forward.1} parent=72 // pred_check_branch
          %383 = sbr.rel (%p381) target = $region77
        $region76: #{epmoe_forward.1} parent=72 // pred_region
          _
        $region77: #{epmoe_forward.1} parent=72 // pred_fallthru
          _
        %s384 = sld [smem:[#allocation5 + %s31]]
        %p385 = scmp.eq.s32.totalorder %s384, 0
        %s386 = scalar_select %p385, 0, %s31
        %s387 = smul.u32 4, %s386
        %p388 = scmp.lt.s32.totalorder %s387, 35
        %s389 = scalar_select %p388, %s387, 35
        %s390 = smul.addr %s389, 4
        %s391 = scalar_lea.vmem %s2, %s390
        %p392 = pneg %p66
        %p393 = pneg %p63
        %s394 = sld [smem:[#allocation4 + %s31]]
        %s395 = sld [smem:[#allocation5 + %s31]]
        %p396 = scmp.eq.s32.totalorder %s395, 0
        %s397 = scalar_select %p396, 1, %s32
        %s398 = smul.u32 32, %s397
        %p399 = scmp.lt.s32.totalorder %s394, 7
        %s400 = scalar_select %p399, %s394, 7
        %p401 = scmp.lt.s32.totalorder %s398, 63
        %s402 = scalar_select %p401, %s398, 63
        %s403 = smul.addr %s400, 64
        %s404 = sadd.s32 %s402, %s403
        %s405 = smul.addr %s404, 4
        %s406 = scalar_lea.vmem %s3, %s405
        %p407 = pneg %p102
        %p408 = pneg %p99
        %s409 = sand.u32 %s125, 1
        %s410 = sand.u32 %s125, 1
        %s411 = smul.addr %s410, 64
        %s412 = scalar_lea.vmem [#allocation6], %s411
        %p413 = pneg %p138
        %p414 = pneg %p135
        %s415 = smul.u32 4, %s31
        %p416 = scmp.lt.s32.totalorder %s415, 35
        %s417 = scalar_select %p416, %s415, 35
        %s418 = smul.addr %s417, 8
        %s419 = scalar_lea.vmem %s5, %s418
        %p420 = pneg %p164
        %p421 = pneg %p161
        %p422 = pneg %p190
        %p423 = pneg %p187
        %s424 = smul.u32 4, %s31
        %p425 = scmp.lt.s32.totalorder %s424, 35
        %s426 = scalar_select %p425, %s424, 35
        %s427 = smul.addr %s426, 4
        %s428 = scalar_lea.vmem %s6, %s427
        %s429 = sld [smem:[#allocation5 + %s31]]
        %p430 = scmp.eq.s32.totalorder %s429, 0
        %s431 = scalar_select %p430, 0, %s31
        %s432 = smul.u32 4, %s431
        %p433 = scmp.lt.s32.totalorder %s432, 35
        %s434 = scalar_select %p433, %s432, 35
        %s435 = smul.addr %s434, 4
        %s436 = scalar_lea.vmem %s2, %s435
        %s437 = sld [smem:[#allocation5 + %s31]]
        %p438 = scmp.eq.s32.totalorder %s437, 0
        %s439 = scalar_select %p438, 0, %s31
        %s440 = smul.u32 4, %s439
        %s441 = sld [smem:[#allocation4 + %s31]]
        %s442 = sld [smem:[#allocation5 + %s31]]
        %p443 = scmp.eq.s32.totalorder %s442, 0
        %s444 = scalar_select %p443, 1, %s32
        %s445 = smul.u32 32, %s444
        %p446 = scmp.lt.s32.totalorder %s441, 7
        %s447 = scalar_select %p446, %s441, 7
        %p448 = scmp.lt.s32.totalorder %s445, 63
        %s449 = scalar_select %p448, %s445, 63
        %s450 = smul.addr %s447, 64
        %s451 = sadd.s32 %s449, %s450
        %s452 = smul.addr %s451, 4
        %s453 = scalar_lea.vmem %s3, %s452
        %s454 = sld [smem:[#allocation4 + %s31]]
        %s455 = sld [smem:[#allocation5 + %s31]]
        %p456 = scmp.eq.s32.totalorder %s455, 0
        %s457 = scalar_select %p456, 1, %s32
        %s458 = smul.u32 32, %s457
        %s459 = sld [smem:[#allocation4 + %s31]]
        %s460 = sld [smem:[#allocation5 + %s31]]
        %p461 = scmp.eq.s32.totalorder %s460, 0
        %s462 = scalar_select %p461, 1, %s32
        %s463 = smul.u32 4, %s31
        %p464 = scmp.lt.s32.totalorder %s463, 35
        %s465 = scalar_select %p464, %s463, 35
        %s466 = smul.addr %s465, 8
        %s467 = scalar_lea.vmem %s5, %s466
        %s468 = smul.u32 4, %s31
        %s469 = smul.u32 4, %s31
        %p470 = scmp.lt.s32.totalorder %s469, 35
        %s471 = scalar_select %p470, %s469, 35
        %s472 = smul.addr %s471, 4
        %s473 = scalar_lea.vmem %s6, %s472
        %s474 = smul.u32 4, %s31
        %p476 = scmp.eq.s32.totalorder %s32, 0
        // Predicated region
        $region78: #{epmoe_forward.1} parent=72 // pred_check
          %p477 = pneg %p476
        $region79: #{epmoe_forward.1} parent=72 // pred_check_branch
          %479 = sbr.rel (%p477) target = $region81
        $region80: #{epmoe_forward.1} parent=72 // pred_region
          %480 = vst [vmem:[#allocation2] sm:$0xff] 0.0
          %481 = vst [vmem:[#allocation2 + $0x8] sm:$0xff] 0.0
          %482 = vst [vmem:[#allocation2 + $0x10] sm:$0xff] 0.0
          %483 = vst [vmem:[#allocation2 + $0x18] sm:$0xff] 0.0
        $region81: #{epmoe_forward.1} parent=72 // pred_fallthru
          _
        %s484 = sld [smem:[#allocation5 + %s31]]
        %p485 = scmp.ne.s32.totalorder %s484, 0
        // Predicated region
        $region82: #{epmoe_forward.1} parent=72 // pred_check
          %p486 = pneg %p485
        $region83: #{epmoe_forward.1} parent=72 // pred_check_branch
          %488 = sbr.rel (%p486) target = $region85
        $region84: #{epmoe_forward.1} parent=72 // pred_region
          %v489 = vld [vmem:[%s436] sm:$0xf]
          %v490 = vld [vmem:[%s436 + $0x4] sm:$0xf]
          %v491 = vld [vmem:[%s436 + $0x8] sm:$0xf]
          %v492 = vld [vmem:[%s436 + $0xc] sm:$0xf]
          %v493 = vld [vmem:[%s453] sm:$0xf]
          %v494 = vld [vmem:[%s453 + $0x4] sm:$0xf]
          %v495 = vld [vmem:[%s453 + $0x8] sm:$0xf]
          %v496 = vld [vmem:[%s453 + $0xc] sm:$0xf]
          %v497 = vld [vmem:[%s453 + $0x10] sm:$0xf]
          %v498 = vld [vmem:[%s453 + $0x14] sm:$0xf]
          %v499 = vld [vmem:[%s453 + $0x18] sm:$0xf]
          %v500 = vld [vmem:[%s453 + $0x1c] sm:$0xf]
          %v501 = vld [vmem:[%s453 + $0x20] sm:$0xf]
          %v502 = vld [vmem:[%s453 + $0x24] sm:$0xf]
          %v503 = vld [vmem:[%s453 + $0x28] sm:$0xf]
          %v504 = vld [vmem:[%s453 + $0x2c] sm:$0xf]
          %v505 = vld [vmem:[%s453 + $0x30] sm:$0xf]
          %v506 = vld [vmem:[%s453 + $0x34] sm:$0xf]
          %v507 = vld [vmem:[%s453 + $0x38] sm:$0xf]
          %v508 = vld [vmem:[%s453 + $0x3c] sm:$0xf]
          %v509 = vld [vmem:[%s453 + $0x40] sm:$0xf]
          %v510 = vld [vmem:[%s453 + $0x44] sm:$0xf]
          %v511 = vld [vmem:[%s453 + $0x48] sm:$0xf]
          %v512 = vld [vmem:[%s453 + $0x4c] sm:$0xf]
          %v513 = vld [vmem:[%s453 + $0x50] sm:$0xf]
          %v514 = vld [vmem:[%s453 + $0x54] sm:$0xf]
          %v515 = vld [vmem:[%s453 + $0x58] sm:$0xf]
          %v516 = vld [vmem:[%s453 + $0x5c] sm:$0xf]
          %v517 = vld [vmem:[%s453 + $0x60] sm:$0xf]
          %v518 = vld [vmem:[%s453 + $0x64] sm:$0xf]
          %v519 = vld [vmem:[%s453 + $0x68] sm:$0xf]
          %v520 = vld [vmem:[%s453 + $0x6c] sm:$0xf]
          %v521 = vld [vmem:[%s453 + $0x70] sm:$0xf]
          %v522 = vld [vmem:[%s453 + $0x74] sm:$0xf]
          %v523 = vld [vmem:[%s453 + $0x78] sm:$0xf]
          %v524 = vld [vmem:[%s453 + $0x7c] sm:$0xf]
          %v529 = vunpack.c.l.b16 %v489
          %v530 = vunpack.c.l.b16 %v490
          %v531 = vunpack.c.l.b16 %v491
          %v532 = vunpack.c.l.b16 %v492
          %v533 = vpack.c.b16 %v530, %v529
          %v534 = vpack.c.b16 %v532, %v531
          %v569 = vunpack.c.l.b16 %v493
          %v570 = vunpack.c.l.b16 %v494
          %v571 = vunpack.c.l.b16 %v495
          %v572 = vunpack.c.l.b16 %v496
          %v573 = vunpack.c.l.b16 %v497
          %v574 = vunpack.c.l.b16 %v498
          %v575 = vunpack.c.l.b16 %v499
          %v576 = vunpack.c.l.b16 %v500
          %v577 = vunpack.c.l.b16 %v501
          %v578 = vunpack.c.l.b16 %v502
          %v579 = vunpack.c.l.b16 %v503
          %v580 = vunpack.c.l.b16 %v504
          %v581 = vunpack.c.l.b16 %v505
          %v582 = vunpack.c.l.b16 %v506
          %v583 = vunpack.c.l.b16 %v507
          %v584 = vunpack.c.l.b16 %v508
          %v585 = vunpack.c.l.b16 %v509
          %v586 = vunpack.c.l.b16 %v510
          %v587 = vunpack.c.l.b16 %v511
          %v588 = vunpack.c.l.b16 %v512
          %v589 = vunpack.c.l.b16 %v513
          %v590 = vunpack.c.l.b16 %v514
          %v591 = vunpack.c.l.b16 %v515
          %v592 = vunpack.c.l.b16 %v516
          %v593 = vunpack.c.l.b16 %v517
          %v594 = vunpack.c.l.b16 %v518
          %v595 = vunpack.c.l.b16 %v519
          %v596 = vunpack.c.l.b16 %v520
          %v597 = vunpack.c.l.b16 %v521
          %v598 = vunpack.c.l.b16 %v522
          %v599 = vunpack.c.l.b16 %v523
          %v600 = vunpack.c.l.b16 %v524
          %v601 = vpack.c.b16 %v570, %v569
          %v602 = vpack.c.b16 %v572, %v571
          %v603 = vpack.c.b16 %v574, %v573
          %v604 = vpack.c.b16 %v576, %v575
          %v605 = vpack.c.b16 %v578, %v577
          %v606 = vpack.c.b16 %v580, %v579
          %v607 = vpack.c.b16 %v582, %v581
          %v608 = vpack.c.b16 %v584, %v583
          %v609 = vpack.c.b16 %v586, %v585
          %v610 = vpack.c.b16 %v588, %v587
          %v611 = vpack.c.b16 %v590, %v589
          %v612 = vpack.c.b16 %v592, %v591
          %v613 = vpack.c.b16 %v594, %v593
          %v614 = vpack.c.b16 %v596, %v595
          %v615 = vpack.c.b16 %v598, %v597
          %v616 = vpack.c.b16 %v600, %v599
          %633 = vmatprep.subr.bf16.mxu0 0
          %634 = vmatpush1.bf16.xpose.msra.mxu0 %v608
          %635 = vmatprep.subr.bf16.mxu0 0
          %636 = vmatpush1.bf16.xpose.msra.mxu0 %v607
          %637 = vmatprep.subr.bf16.mxu0 0
          %638 = vmatpush1.bf16.xpose.msra.mxu0 %v606
          %639 = vmatprep.subr.bf16.mxu0 0
          %640 = vmatpush1.bf16.xpose.msra.mxu0 %v605
          %641 = vmatprep.subr.bf16.mxu0 0
          %642 = vmatpush1.bf16.xpose.msra.mxu0 %v604
          %643 = vmatprep.subr.bf16.mxu0 0
          %644 = vmatpush1.bf16.xpose.msra.mxu0 %v603
          %645 = vmatprep.subr.bf16.mxu0 0
          %646 = vmatpush1.bf16.xpose.msra.mxu0 %v602
          %647 = vmatprep.subr.bf16.mxu0 0
          %648 = vmatpush1.bf16.xpose.msra.mxu0 %v601
          %649 = vmatprep.subr.bf16.mxu0 0
          %650 = vmatpush2.bf16.xpose.msra.mxu0 %v616
          %651 = vmatprep.subr.bf16.mxu0 0
          %652 = vmatpush2.bf16.xpose.msra.mxu0 %v615
          %653 = vmatprep.subr.bf16.mxu0 0
          %654 = vmatpush2.bf16.xpose.msra.mxu0 %v614
          %655 = vmatprep.subr.bf16.mxu0 0
          %656 = vmatpush2.bf16.xpose.msra.mxu0 %v613
          %657 = vmatprep.subr.bf16.mxu0 0
          %658 = vmatpush2.bf16.xpose.msra.mxu0 %v612
          %659 = vmatprep.subr.bf16.mxu0 0
          %660 = vmatpush2.bf16.xpose.msra.mxu0 %v611
          %661 = vmatprep.subr.bf16.mxu0 0
          %662 = vmatpush2.bf16.xpose.msra.mxu0 %v610
          %663 = vmatprep.subr.bf16.mxu0 0
          %664 = vmatpush2.bf16.xpose.msra.mxu0 %v609
          %665 = vmatprep.mubr.bf16.mxu0 0
          %666 = vmatmul.mubr.bf16.gmra.mxu0 %v533
          %v667 = vpop.f32.mrf.mxu0
          %v668 = vadd.f32 0.0, %v667
          %v669 = vpop.f32.mrf.mxu0
          %v670 = vadd.f32 0.0, %v669
          %v671 = vpop.f32.mrf.mxu0
          %v672 = vadd.f32 0.0, %v671
          %v673 = vpop.f32.mrf.mxu0
          %v674 = vadd.f32 0.0, %v673
          %675 = vmatprep.mubr.bf16.mxu0 0
          %676 = vmatmul.mubr.bf16.gmra.mxu0 %v534
          %v677 = vpop.f32.mrf.mxu0
          %v678 = vadd.f32 0.0, %v677
          %v679 = vpop.f32.mrf.mxu0
          %v680 = vadd.f32 0.0, %v679
          %v681 = vpop.f32.mrf.mxu0
          %v682 = vadd.f32 0.0, %v681
          %v683 = vpop.f32.mrf.mxu0
          %v684 = vadd.f32 0.0, %v683
          %685 = vdwg.mxu0
          %v686 = vxor.u32 %v668, 2147483648
          %v687 = vxor.u32 %v672, 2147483648
          %v688 = vxor.u32 %v678, 2147483648
          %v689 = vxor.u32 %v682, 2147483648
          %v690 = vmul.f32 %v686, 1.442695
          %v691 = vpow.pop %v690
          %v692 = vmul.f32 %v687, 1.442695
          %v693 = vpow.pop %v692
          %v694 = vmul.f32 %v688, 1.442695
          %v695 = vpow.pop %v694
          %v696 = vmul.f32 %v689, 1.442695
          %v697 = vpow.pop %v696
          %v698 = vadd.f32 %v691, 1.0
          %v699 = vadd.f32 %v693, 1.0
          %v700 = vadd.f32 %v695, 1.0
          %v701 = vadd.f32 %v697, 1.0
          %v702 = vrcp.pop %v698
          %v703 = vmul.f32 1.0, %v702
          %v704 = vrcp.pop %v699
          %v705 = vmul.f32 1.0, %v704
          %v706 = vrcp.pop %v700
          %v707 = vmul.f32 1.0, %v706
          %v708 = vrcp.pop %v701
          %v709 = vmul.f32 1.0, %v708
          %v710 = vmul.f32 %v668, %v703
          %v711 = vmul.f32 %v672, %v705
          %v712 = vmul.f32 %v678, %v707
          %v713 = vmul.f32 %v682, %v709
          %v714 = vmul.f32 %v710, %v670
          %v715 = vmul.f32 %v711, %v674
          %v716 = vmul.f32 %v712, %v680
          %v717 = vmul.f32 %v713, %v684
          %v718 = vld [vmem:[#allocation2] sm:$0xff]
          %v719 = vld [vmem:[#allocation2 + $0x8] sm:$0xff]
          %v720 = vld [vmem:[#allocation2 + $0x10] sm:$0xff]
          %v721 = vld [vmem:[#allocation2 + $0x18] sm:$0xff]
          %v722 = vpack.c.bf16 %v715, %v714
          %v723 = vpack.c.bf16 %v717, %v716
          %v724 = vld [vmem:[%s380] sm:$0xf]
          %v725 = vld [vmem:[%s380 + $0x4] sm:$0xf]
          %v726 = vld [vmem:[%s380 + $0x8] sm:$0xf]
          %v727 = vld [vmem:[%s380 + $0xc] sm:$0xf]
          %v728 = vld [vmem:[%s380 + $0x10] sm:$0xf]
          %v729 = vld [vmem:[%s380 + $0x14] sm:$0xf]
          %v730 = vld [vmem:[%s380 + $0x18] sm:$0xf]
          %v731 = vld [vmem:[%s380 + $0x1c] sm:$0xf]
          %v732 = vld [vmem:[%s380 + $0x20] sm:$0xf]
          %v733 = vld [vmem:[%s380 + $0x24] sm:$0xf]
          %v734 = vld [vmem:[%s380 + $0x28] sm:$0xf]
          %v735 = vld [vmem:[%s380 + $0x2c] sm:$0xf]
          %v736 = vld [vmem:[%s380 + $0x30] sm:$0xf]
          %v737 = vld [vmem:[%s380 + $0x34] sm:$0xf]
          %v738 = vld [vmem:[%s380 + $0x38] sm:$0xf]
          %v739 = vld [vmem:[%s380 + $0x3c] sm:$0xf]
          %v756 = vunpack.c.l.b16 %v724
          %v757 = vunpack.c.l.b16 %v725
          %v758 = vunpack.c.l.b16 %v726
          %v759 = vunpack.c.l.b16 %v727
          %v760 = vunpack.c.l.b16 %v728
          %v761 = vunpack.c.l.b16 %v729
          %v762 = vunpack.c.l.b16 %v730
          %v763 = vunpack.c.l.b16 %v731
          %v764 = vunpack.c.l.b16 %v732
          %v765 = vunpack.c.l.b16 %v733
          %v766 = vunpack.c.l.b16 %v734
          %v767 = vunpack.c.l.b16 %v735
          %v768 = vunpack.c.l.b16 %v736
          %v769 = vunpack.c.l.b16 %v737
          %v770 = vunpack.c.l.b16 %v738
          %v771 = vunpack.c.l.b16 %v739
          %v772 = vpack.c.b16 %v757, %v756
          %v773 = vpack.c.b16 %v759, %v758
          %v774 = vpack.c.b16 %v761, %v760
          %v775 = vpack.c.b16 %v763, %v762
          %v776 = vpack.c.b16 %v765, %v764
          %v777 = vpack.c.b16 %v767, %v766
          %v778 = vpack.c.b16 %v769, %v768
          %v779 = vpack.c.b16 %v771, %v770
          %788 = vmatprep.subr.bf16.mxu0 0
          %789 = vmatpush1.bf16.xpose.msra.mxu0 %v779
          %790 = vmatprep.subr.bf16.mxu0 0
          %791 = vmatpush1.bf16.xpose.msra.mxu0 %v778
          %792 = vmatprep.subr.bf16.mxu0 0
          %793 = vmatpush1.bf16.xpose.msra.mxu0 %v777
          %794 = vmatprep.subr.bf16.mxu0 0
          %795 = vmatpush1.bf16.xpose.msra.mxu0 %v776
          %796 = vmatprep.subr.bf16.mxu0 0
          %797 = vmatpush1.bf16.xpose.msra.mxu0 %v775
          %798 = vmatprep.subr.bf16.mxu0 0
          %799 = vmatpush1.bf16.xpose.msra.mxu0 %v774
          %800 = vmatprep.subr.bf16.mxu0 0
          %801 = vmatpush1.bf16.xpose.msra.mxu0 %v773
          %802 = vmatprep.subr.bf16.mxu0 0
          %803 = vmatpush1.bf16.xpose.msra.mxu0 %v772
          %804 = vmatprep.subr.bf16.mxu0 0
          %805 = vmatpush2.bf16.xpose.msra.mxu0 0
          %806 = vmatprep.subr.bf16.mxu0 0
          %807 = vmatpush2.bf16.xpose.msra.mxu0 0
          %808 = vmatprep.subr.bf16.mxu0 0
          %809 = vmatpush2.bf16.xpose.msra.mxu0 0
          %810 = vmatprep.subr.bf16.mxu0 0
          %811 = vmatpush2.bf16.xpose.msra.mxu0 0
          %812 = vmatprep.subr.bf16.mxu0 0
          %813 = vmatpush2.bf16.xpose.msra.mxu0 0
          %814 = vmatprep.subr.bf16.mxu0 0
          %815 = vmatpush2.bf16.xpose.msra.mxu0 0
          %816 = vmatprep.subr.bf16.mxu0 0
          %817 = vmatpush2.bf16.xpose.msra.mxu0 0
          %818 = vmatprep.subr.bf16.mxu0 0
          %819 = vmatpush2.bf16.xpose.msra.mxu0 0
          %820 = vmatprep.mubr.bf16.mxu0 0
          %821 = vmatmul.mubr.bf16.gmra.mxu0 %v722
          %v822 = vpop.f32.mrf.mxu0
          %v823 = vadd.f32 0.0, %v822
          %v824 = vpop.f32.mrf.mxu0
          %v825 = vpop.f32.mrf.mxu0
          %v826 = vadd.f32 0.0, %v825
          %v827 = vpop.f32.mrf.mxu0
          %828 = vmatprep.mubr.bf16.mxu0 0
          %829 = vmatmul.mubr.bf16.gmra.mxu0 %v723
          %v830 = vpop.f32.mrf.mxu0
          %v831 = vadd.f32 0.0, %v830
          %v832 = vpop.f32.mrf.mxu0
          %v833 = vpop.f32.mrf.mxu0
          %v834 = vadd.f32 0.0, %v833
          %v835 = vpop.f32.mrf.mxu0
          %836 = vdwg.mxu0
          %v837 = vadd.f32 %v718, %v823
          %v838 = vadd.f32 %v719, %v826
          %v839 = vadd.f32 %v720, %v831
          %v840 = vadd.f32 %v721, %v834
          %841 = vst [vmem:[#allocation2] sm:$0xff] %v837
          %842 = vst [vmem:[#allocation2 + $0x8] sm:$0xff] %v838
          %843 = vst [vmem:[#allocation2 + $0x10] sm:$0xff] %v839
          %844 = vst [vmem:[#allocation2 + $0x18] sm:$0xff] %v840
        $region85: #{epmoe_forward.1} parent=72 // pred_fallthru
          _
        %p845 = scmp.eq.s32.totalorder %s32, 1
        // Predicated region
        $region86: #{epmoe_forward.1} parent=72 // pred_check
          %p846 = pneg %p845
        $region87: #{epmoe_forward.1} parent=72 // pred_check_branch
          %848 = sbr.rel (%p846) target = $region89
        $region88: #{epmoe_forward.1} parent=72 // pred_region
          %v849 = vld [vmem:[#allocation2] sm:$0xff]
          %v850 = vld [vmem:[#allocation2 + $0x8] sm:$0xff]
          %v851 = vld [vmem:[#allocation2 + $0x10] sm:$0xff]
          %v852 = vld [vmem:[#allocation2 + $0x18] sm:$0xff]
          %v853 = vld [vmem:[%s467] sm:$0xff]
          %v854 = vld [vmem:[%s467 + $0x8] sm:$0xff]
          %v855 = vld [vmem:[%s467 + $0x10] sm:$0xff]
          %v856 = vld [vmem:[%s467 + $0x18] sm:$0xff]
          %858 = vset.pattern.permute.xlu0 0
          %859 = vperm.xlu0 %858, %v853
          %v860 = vpop.permute.xlu0 %859
          %863 = vset.pattern.permute.xlu0 0
          %864 = vperm.xlu0 %863, %v854
          %v865 = vpop.permute.xlu0 %864
          %868 = vset.pattern.permute.xlu0 0
          %869 = vperm.xlu0 %868, %v855
          %v870 = vpop.permute.xlu0 %869
          %873 = vset.pattern.permute.xlu0 0
          %874 = vperm.xlu0 %873, %v856
          %v875 = vpop.permute.xlu0 %874
          %v877 = vmul.f32 %v849, %v860
          %v878 = vmul.f32 %v850, %v865
          %v879 = vmul.f32 %v851, %v870
          %v880 = vmul.f32 %v852, %v875
          %v881 = vpack.c.bf16 %v878, %v877
          %v882 = vpack.c.bf16 %v880, %v879
          %v885 = vunpack.c.l.b16 %v881
          %v886 = vunpack.c.h.b16 %v881
          %v887 = vunpack.c.l.b16 %v882
          %v888 = vunpack.c.h.b16 %v882
          %v889 = vpack.c.b16 %v885, %v885
          %v890 = vpack.c.b16 %v886, %v886
          %v891 = vpack.c.b16 %v887, %v887
          %v892 = vpack.c.b16 %v888, %v888
          %897 = vst [vmem:[%s473] sm:$0xf] %v889
          %898 = vst [vmem:[%s473 + $0x4] sm:$0xf] %v890
          %899 = vst [vmem:[%s473 + $0x8] sm:$0xf] %v891
          %900 = vst [vmem:[%s473 + $0xc] sm:$0xf] %v892
        $region89: #{epmoe_forward.1} parent=72 // pred_fallthru
          _
        %s901 = smul.u32 4, %s31
        %p902 = scmp.lt.s32.totalorder %s901, 35
        %s903 = scalar_select %p902, %s901, 35
        %s904 = smul.addr %s903, 4
        %s905 = scalar_lea.vmem %s6, %s904
        // Predicated region
        $region90: #{epmoe_forward.1} parent=72 // pred_check
          %p906 = pneg %p187
        $region91: #{epmoe_forward.1} parent=72 // pred_check_branch
          %908 = sbr.rel (%p906) target = $region93
        $region92: #{epmoe_forward.1} parent=72 // pred_region
          %s909 = smul.u32 4, %s31
        $region93: #{epmoe_forward.1} parent=72 // pred_fallthru
          _
      $region73: #{epmoe_forward.1} parent=5 // pred_fallthru
        _
      %p910 = scmp.le.s32.totalorder 2, %s22
      // Predicated region
      $region94: #{epmoe_forward.1} parent=5 // pred_check
        %p911 = pneg %p910
      $region95: #{epmoe_forward.1} parent=5 // pred_check_branch
        %913 = sbr.rel (%p911) target = $region97
      $region96: #{epmoe_forward.1} parent=5 // pred_region
        %s914 = ssub.s32 %s22, 2
        // Predicated region
        $region98: #{epmoe_forward.1} parent=96 // pred_check
          %p915 = pneg %p193
        $region99: #{epmoe_forward.1} parent=96 // pred_check_branch
          %917 = sbr.rel (%p915) target = $region101
        $region100: #{epmoe_forward.1} parent=96 // pred_region
          %s918 = smul.u32 4, %s33
          %p919 = scmp.lt.s32.totalorder %s918, 35
          %s920 = scalar_select %p919, %s918, 35
          %s921 = smul.addr %s920, 4
          %s922 = scalar_lea.vmem %s6, %s921
        $region101: #{epmoe_forward.1} parent=96 // pred_fallthru
          _
      $region97: #{epmoe_forward.1} parent=5 // pred_fallthru
        _
    $region6: #{epmoe_forward.1} parent=1 // loop_footer
      %s26 = sadd.s32 1, %s22
    $region7: #{epmoe_forward.1} parent=1 // loop_footer_branch
      %21 = sbr.rel target = $region3
    $region8: #{epmoe_forward.1} parent=1 // loop_exit
      _

</llo_original>
